<compile_context>
chip_gen: v6e
topology: v6e:2x2x1
jax: 0.10.0
libtpu: 0.0.40
codegen_flags: <defaults>
</compile_context>

<pallas_src>
import functools

import jax
import jax.numpy as jnp
from jax import lax
from jax.experimental import pallas as pl
from jax.experimental.pallas import tpu as pltpu


_LANES = 128                       # vreg lane width
_THW = 4096                        # hw tile (multiple of 128) when hw is tiled
_TM_TILED = 128                    # row tile for the 2-D (tiled-hw) path
_TARGET_BYTES = 2 * 1024 * 1024    # ~2 MiB per pipelined step (HBM-bound sweet spot)
_TM_CAP = 8192                     # cap row tile in the small-hw path


def _sublane_multiple(dtype):
    # f32 -> 8, bf16/f16 -> 16, int8/fp8 -> 32 (sublane packing requirement)
    return max(8, 32 // jnp.dtype(dtype).itemsize)


def _gap_small_kernel(x_ref, o_ref, *, hw):
    # Whole H*W in one block: single-stage lane reduction, f32 accumulation.
    s = jnp.sum(x_ref[...].astype(jnp.float32), axis=-1, keepdims=True)
    o_ref[...] = (s * jnp.float32(1.0 / hw)).astype(o_ref.dtype)


def _gap_tiled_kernel(x_ref, o_ref, acc_ref, *, tm, thw, hw):
    # 2-D grid: i over row tiles ("parallel"), k over hw tiles ("arbitrary", last).
    k = pl.program_id(1)
    nk = pl.num_programs(1)

    @pl.when(k == 0)
    def _init():
        acc_ref[...] = jnp.zeros_like(acc_ref)

    n_chunks = thw // _LANES
    ragged = (hw % thw) != 0  # static: does the last hw tile run past hw?

    def accumulate(masked):
        # Stage 1: VPU adds of 128-lane chunks into a (tm, 128) f32 partial.
        # Only one lane-chunk is upcast to f32 at a time (no full-tile upcast).
        partial = jnp.zeros((tm, _LANES), jnp.float32)
        for c in range(n_chunks):
            chunk = x_ref[:, c * _LANES:(c + 1) * _LANES].astype(jnp.float32)
            if masked:
                col = (k * thw + c * _LANES
                       + lax.broadcasted_iota(jnp.int32, (tm, _LANES), 1))
                chunk = jnp.where(col < hw, chunk, 0.0)
            partial = partial + chunk
        acc_ref[...] += partial

    if ragged:
        # Keep the common path mask-free; only the last (ragged) hw tile masks.
        @pl.when(k < nk - 1)
        def _full_tiles():
            accumulate(False)

        @pl.when(k == nk - 1)
        def _edge_tile():
            accumulate(True)
    else:
        accumulate(False)

    @pl.when(k == nk - 1)
    def _finalize():
        # Stage 2: single cross-lane (XLU) reduce per row tile, then scale by 1/HW.
        row_sum = jnp.sum(acc_ref[...], axis=-1, keepdims=True)
        o_ref[...] = (row_sum * jnp.float32(1.0 / hw)).astype(o_ref.dtype)


def gap_forward(inputs, input_kws=None):
    """Global average pooling over spatial dims of an NCHW tensor.

    Matches torch.nn.AdaptiveAvgPool2d((1, 1)): (N, C, H, W) -> (N, C, 1, 1).
    """
    del input_kws  # unused, kept for signature parity with the PyTorch module
    N, C, H, W = inputs.shape
    rows = N * C
    hw = H * W
    dtype = inputs.dtype
    itemsize = jnp.dtype(dtype).itemsize
    sub = _sublane_multiple(dtype)
    x2d = inputs.reshape(rows, hw)

    if hw > _THW:
        # Large spatial: tile both rows and hw; resident f32 accumulator.
        tm = _TM_TILED if rows >= _TM_TILED else rows
        grid = (pl.cdiv(rows, tm), pl.cdiv(hw, _THW))
        out2d = pl.pallas_call(
            functools.partial(_gap_tiled_kernel, tm=tm, thw=_THW, hw=hw),
            out_shape=jax.ShapeDtypeStruct((rows, 1), dtype),
            grid_spec=pltpu.PrefetchScalarGridSpec(
                num_scalar_prefetch=0,
                grid=grid,
                in_specs=[pl.BlockSpec((tm, _THW), lambda i, k: (i, k))],
                out_specs=pl.BlockSpec((tm, 1), lambda i, k: (i, 0)),
                scratch_shapes=[pltpu.VMEM((tm, _LANES), jnp.float32)],
            ),
            compiler_params=pltpu.CompilerParams(
                dimension_semantics=("parallel", "arbitrary")),
        )(x2d)
    else:
        # Small spatial: whole hw per block, adaptive row tile (~2 MiB per step).
        tm = (_TARGET_BYTES // max(1, hw * itemsize)) // sub * sub
        tm = max(sub, min(tm, _TM_CAP))
        if tm >= rows:
            tm = rows  # full-dim block is always legal
        grid = (pl.cdiv(rows, tm),)
        out2d = pl.pallas_call(
            functools.partial(_gap_small_kernel, hw=hw),
            out_shape=jax.ShapeDtypeStruct((rows, 1), dtype),
            grid_spec=pltpu.PrefetchScalarGridSpec(
                num_scalar_prefetch=0,
                grid=grid,
                in_specs=[pl.BlockSpec((tm, hw), lambda i: (i, 0))],
                out_specs=pl.BlockSpec((tm, 1), lambda i: (i, 0)),
            ),
            compiler_params=pltpu.CompilerParams(
                dimension_semantics=("parallel",)),
        )(x2d)

    return out2d.reshape(N, C, 1, 1)


if __name__ == "__main__":
    key = jax.random.PRNGKey(0)
    k0, k1 = jax.random.split(key)

    # Small-shape check (exercises the 1-D row-tiled path).
    x = jax.random.normal(k0, (2, 4, 16, 16), dtype=jnp.float32)
    out = jax.block_until_ready(gap_forward(x, input_kws=None))
    ref = jnp.mean(x, axis=(2, 3), keepdims=True)
    assert out.shape == (2, 4, 1, 1), out.shape
    assert jnp.allclose(out, ref, atol=1e-5, rtol=1e-5)

    # Exercise the 2-D tiled-hw path with a ragged last hw tile (80*80 = 6400 > 4096).
    x2 = jax.random.normal(k1, (1, 8, 80, 80), dtype=jnp.float32)
    out2 = jax.block_until_ready(gap_forward(x2, input_kws=None))
    ref2 = jnp.mean(x2, axis=(2, 3), keepdims=True)
    assert out2.shape == (1, 8, 1, 1), out2.shape
    assert jnp.allclose(out2, ref2, atol=1e-5, rtol=1e-5)

    print("KERNEL_OK")
</pallas_src>

<mosaic_0001>
module attributes {stable_mosaic.version = 11 : i64} {
  func.func @_gap_small_kernel(%arg0: i32, %arg1: memref<8x256xf32, #tpu.memory_space<vmem>>, %arg2: memref<8x1xf32, #tpu.memory_space<vmem>>) attributes {dimension_semantics = [#tpu.dimension_semantics<parallel>], iteration_bounds = array<i64: 1>, scalar_prefetch = 0 : i64, scratch_operands = 0 : i64, tpu.core_type = #tpu.core_type<tc>, window_params = [{transform_indices = @transform_0, window_bounds = array<i64: 8, 256>}, {transform_indices = @transform_1, window_bounds = array<i64: 8, 1>}]} {
    %c0 = arith.constant 0 : index
    %c0_0 = arith.constant 0 : index
    %0 = vector.load %arg1[%c0, %c0_0] : memref<8x256xf32, #tpu.memory_space<vmem>>, vector<8x256xf32>
    %cst = arith.constant dense<0.000000e+00> : vector<8xf32>
    %1 = vector.multi_reduction <add>, %0, %cst [1] : vector<8x256xf32> to vector<8xf32>
    %2 = vector.shape_cast %1 : vector<8xf32> to vector<8x1xf32>
    %cst_1 = arith.constant 3.906250e-03 : f32
    %3 = vector.broadcast %cst_1 : f32 to vector<8x1xf32>
    %4 = arith.mulf %2, %3 : vector<8x1xf32>
    %c0_2 = arith.constant 0 : index
    %c0_3 = arith.constant 0 : index
    %5 = vector.load %arg2[%c0_2, %c0_3] : memref<8x1xf32, #tpu.memory_space<vmem>>, vector<8x1xf32>
    tpu.vector_store %arg2[%c0_2, %c0_3], %4 {strides = array<i32>} : memref<8x1xf32, #tpu.memory_space<vmem>>, vector<8x1xf32>,
    return
  }
  func.func @transform_0(%arg0: i32) -> (i32, i32) {
    %c0_i32 = arith.constant 0 : i32
    %c0_i32_0 = arith.constant 0 : i32
    return %arg0, %c0_i32 : i32, i32
  }
  func.func @transform_1(%arg0: i32) -> (i32, i32) {
    %c0_i32 = arith.constant 0 : i32
    %c0_i32_0 = arith.constant 0 : i32
    return %arg0, %c0_i32 : i32, i32
  }
}

</mosaic_0001>

<llo_original>
// kernel: tpu_custom_call.1
$region0: #{tpu_custom_call.1}
  #allocation0 [shape = 'u32[]', space=smem, size = 0x4, offset = 0x4, fixed_abs, tag = 'smem constant byte address 0x4 - core index']
  #allocation1 [shape = 'u32[144,128]{1,0:T(1,128)}', space=vmem, size = 0x12000, scoped, tag = 'internal scratch']
  %s0 = inlined_call_operand.hbm [shape: f32[8,256], index: 0, kind: input, shape index: {}]
  %s1 = inlined_call_operand.vmem [shape: f32[8,1], index: 1, kind: output, shape index: {}]
  %s2 = sld [smem:[#allocation0]]
  $region18: #{tpu_custom_call.1} parent=0
    _
  %s4 = ssub.s32 1, %s2
  %s5 = scalar_select 0, %s4, %s2
  $region1: #{tpu_custom_call.1} parent=0
    #allocation2 [shape = 'u8[8192]{0}', space=vmem, size = 0x2000, scoped, tag = 'input window, operand 0, single buffered']
    #allocation3 [shape = 's32[1]{0}', space=sflag, size = 0x4, scoped, tag = 'scoped memory for tpu_custom_call.1']
    %6 = vsyncpa [#allocation3], 0
    // Predicated region
    $region2: #{tpu_custom_call.1} parent=1 // pred_check
      _
    $region3: #{tpu_custom_call.1} parent=1 // pred_check_branch
      %8 = sbr.rel (0) target = $region5
    $region4: #{tpu_custom_call.1} parent=1 // pred_region
      %s10 = ssub.s32 256, 256
      %11 = vsyncadd [#allocation3], %s10
      %s13 = sshll.u32 [#allocation2], 4
      %s14 = int_to_ptr.vmem [resolvable:$true] %s13
      %16 = dma.hbm_to_vmem [thread:$0]  %s0, 256, %s14, [#allocation3]
    $region5: #{tpu_custom_call.1} parent=1 // pred_fallthru
      _
    // Predicated region
    $region6: #{tpu_custom_call.1} parent=1 // pred_check
      _
    $region7: #{tpu_custom_call.1} parent=1 // pred_check_branch
      %18 = sbr.rel (0) target = $region9
    $region8: #{tpu_custom_call.1} parent=1 // pred_region
      %19 = dma.done [#allocation3], 256
    $region9: #{tpu_custom_call.1} parent=1 // pred_fallthru
      _
    %v20 = vld [vmem:[#allocation2] sm:$0xff]
    %v21 = vld [vmem:[#allocation2 + $0x8] sm:$0xff]
    %v22 = vadd.f32 %v20, %v21
    %23 = vadd.xlane.f32.xlu0 %v22
    %v24 = vpop.xlane.xlu0 %23
    %v25 = vmul.f32 %v24, 0.00390625
    %vm26 = vcmask 7168
    %27 = vst.msk [vmem:[%s1] sm:$0xff] %vm26, %v25
    // Predicated region
    $region10: #{tpu_custom_call.1} parent=1 // pred_check
      _
    $region11: #{tpu_custom_call.1} parent=1 // pred_check_branch
      %29 = sbr.rel (0) target = $region13
    $region12: #{tpu_custom_call.1} parent=1 // pred_region
      _
    $region13: #{tpu_custom_call.1} parent=1 // pred_fallthru
      _
    // Predicated region
    $region14: #{tpu_custom_call.1} parent=1 // pred_check
      _
    $region15: #{tpu_custom_call.1} parent=1 // pred_check_branch
      %31 = sbr.rel (0) target = $region17
    $region16: #{tpu_custom_call.1} parent=1 // pred_region
      _
    $region17: #{tpu_custom_call.1} parent=1 // pred_fallthru
      _
    %32 = vsyncpa [#allocation3], 1

</llo_original>
